<compile_context>
chip_gen: v6e
topology: v6e:2x2x1
jax: 0.10.0
libtpu: 0.0.40
codegen_flags: <defaults>
</compile_context>

<pallas_src>
import jax
import jax.numpy as jnp
from jax.experimental import pallas as pl
from jax.experimental.pallas import tpu as pltpu


def disc_kernel(x_ref, w1_ref, b1_ref, w2_ref, b2_ref, o_ref):
    # Cast the f32 activation tile to bf16 in-kernel (no standalone XLA cast
    # pass over x in HBM); MXU matmul with f32 accumulation.
    x_bf = x_ref[...].astype(jnp.bfloat16)
    h = jnp.dot(x_bf, w1_ref[...], preferred_element_type=jnp.float32)
    h = h + b1_ref[...]
    # LeakyReLU(0.1): single VALU max (equivalent to where(h>0, h, 0.1h)).
    h = jnp.maximum(h, 0.1 * h)
    # Layer 2 (128 -> 1): VPU elementwise multiply + XLU lane reduce instead of
    # a 1-column MXU matmul.  Result laid out along lanes -> lane-dense store.
    z = jnp.sum(h * w2_ref[...], axis=-1)[None, :] + b2_ref[...]   # (1, tm)
    # Sigmoid: exp on the EUP, approx reciprocal on the EUP (keeps VALU free).
    o_ref[...] = pl.reciprocal(1.0 + jnp.exp(-z), approx=True).astype(o_ref.dtype)


def _choose_tm(B, F):
    """Adaptive batch tile: biggest lane-aligned tile that fits a VMEM budget,
    with >= 2 grid steps for large B (v7x megacore)."""
    if B <= 128:
        # Single block covering the full array (block_shape == array dims is
        # always legal, even for B not a multiple of 8/128).
        return B
    # Budget ~16 MiB for the double-buffered f32 x tile.
    x_budget = 16 * 1024 * 1024
    tm = (x_budget // (2 * 4 * max(F, 1))) // 128 * 128
    tm = max(128, min(tm, 4096))
    # Don't make the block (much) bigger than the array.
    tm = min(tm, pl.cdiv(B, 128) * 128)
    # Ensure >= 2 grid steps when the batch allows it (both v7x TCs get work).
    b_rounded = (B // 128) * 128
    if b_rounded >= 256:
        tm = min(tm, max(128, (b_rounded // 2) // 128 * 128))
    return tm


def discriminator_forward(x, w1, b1, w2, b2, *, tm=None):
    B, F = x.shape
    H = w1.shape[1]   # 128

    if tm is None:
        tm = _choose_tm(B, F)

    # Small one-time weight prep (weights are tiny relative to x).
    w1_bf16 = w1.astype(jnp.bfloat16)                 # (F, H) resident on MXU side
    b1_row = b1.reshape(1, H).astype(jnp.float32)
    w2_row = w2.reshape(1, H).astype(jnp.float32)     # (H,1) -> (1,H) row for VPU path
    b2_sc = b2.reshape(1, 1).astype(jnp.float32)

    grid = (pl.cdiv(B, tm),)

    # VMEM limit from actual buffer footprint (double-buffered inputs/outputs),
    # with headroom; capped at 32 MiB so it is safe on v7x's 64 MiB VMEM.
    x_buf = 2 * tm * F * 4
    w_buf = 2 * (F * H * 2 + 2 * H * 4 + 4)
    act_buf = tm * H * 4 + tm * H * 2
    out_buf = 2 * tm * 4
    vmem_limit = int(min(32 * 1024 * 1024,
                         max(4 * 1024 * 1024,
                             1.5 * (x_buf + w_buf + act_buf + out_buf))))

    cost = pl.CostEstimate(
        flops=2 * B * F * H + 4 * B * H,
        transcendentals=B,
        bytes_accessed=B * F * 4 + F * H * 2 + 2 * H * 4 + 4 + B * 4,
    )

    out = pl.pallas_call(
        disc_kernel,
        # Lane-dense output: one row of length B; each grid step writes a
        # (1, tm) block (boundary writes are masked for a partial tail block).
        out_shape=jax.ShapeDtypeStruct((1, B), jnp.float32),
        grid_spec=pltpu.PrefetchScalarGridSpec(
            num_scalar_prefetch=0,
            grid=grid,
            in_specs=[
                pl.BlockSpec((tm, F), lambda i: (i, 0)),   # x tile over batch (f32)
                pl.BlockSpec((F, H), lambda i: (0, 0)),    # W1 resident (bf16)
                pl.BlockSpec((1, H), lambda i: (0, 0)),    # b1
                pl.BlockSpec((1, H), lambda i: (0, 0)),    # W2 as a (1,128) row
                pl.BlockSpec((1, 1), lambda i: (0, 0)),    # b2
            ],
            out_specs=pl.BlockSpec((1, tm), lambda i: (0, i)),
        ),
        compiler_params=pltpu.CompilerParams(
            dimension_semantics=("parallel",),
            vmem_limit_bytes=vmem_limit,
        ),
        cost_estimate=cost,
    )(x, w1_bf16, b1_row, w2_row, b2_sc)

    # PyTorch-shaped (B, 1) output.
    return out.reshape(B, 1)


def init_params(key, in_features, hidden=128, out=1):
    # Deterministic init mimicking PyTorch nn.Linear default:
    # U(-1/sqrt(fan_in), 1/sqrt(fan_in)) for both weight and bias.
    k1, k2, k3, k4 = jax.random.split(key, 4)
    bound1 = 1.0 / (in_features ** 0.5)
    bound2 = 1.0 / (hidden ** 0.5)
    w1 = jax.random.uniform(k1, (in_features, hidden), jnp.float32, -bound1, bound1)
    b1 = jax.random.uniform(k2, (1, hidden), jnp.float32, -bound1, bound1)
    w2 = jax.random.uniform(k3, (hidden, out), jnp.float32, -bound2, bound2)
    b2 = jax.random.uniform(k4, (1, out), jnp.float32, -bound2, bound2)
    return w1, b1, w2, b2


def reference_forward(x, w1, b1, w2, b2):
    h = x @ w1 + b1
    h = jnp.where(h > 0, h, 0.1 * h)
    z = h @ w2 + b2
    return jax.nn.sigmoid(z)


def _check(x, w1, b1, w2, b2):
    out = jax.block_until_ready(discriminator_forward(x, w1, b1, w2, b2))
    assert out.shape == (x.shape[0], 1)
    # Loose check vs the full-f32 reference (kernel uses bf16 matmul inputs).
    ref_f32 = reference_forward(x, w1, b1, w2, b2)
    assert jnp.allclose(out, ref_f32, atol=2e-2, rtol=2e-2), "mismatch vs f32 reference"
    # Tighter check vs a bf16-cast reference (isolates real bugs from rounding).
    ref_bf16 = reference_forward(
        x.astype(jnp.bfloat16).astype(jnp.float32),
        w1.astype(jnp.bfloat16).astype(jnp.float32),
        b1, w2, b2)
    assert jnp.allclose(out, ref_bf16, atol=1e-2, rtol=1e-2), "mismatch vs bf16 reference"


if __name__ == "__main__":
    key = jax.random.PRNGKey(0)
    kx1, kx2, kp = jax.random.split(key, 3)

    in_features = 64   # small shape consistent with Linear(in_features, 128)
    w1, b1, w2, b2 = init_params(kp, in_features)

    # Small batch: single full block (block_shape == array dims).
    x_small = jax.random.normal(kx1, (8, in_features), jnp.float32)
    _check(x_small, w1, b1, w2, b2)

    # Larger, non-divisible batch: multi-step grid with a masked tail block.
    x_big = jax.random.normal(kx2, (300, in_features), jnp.float32)
    _check(x_big, w1, b1, w2, b2)

    print("KERNEL_OK")
</pallas_src>

<mosaic_0001>
module attributes {stable_mosaic.version = 11 : i64} {
  func.func @disc_kernel(%arg0: i32, %arg1: memref<8x64xf32, #tpu.memory_space<vmem>>, %arg2: memref<64x128xbf16, #tpu.memory_space<vmem>>, %arg3: memref<1x128xf32, #tpu.memory_space<vmem>>, %arg4: memref<1x128xf32, #tpu.memory_space<vmem>>, %arg5: memref<1x1xf32, #tpu.memory_space<vmem>>, %arg6: memref<1x8xf32, #tpu.memory_space<vmem>>) attributes {dimension_semantics = [#tpu.dimension_semantics<parallel>], iteration_bounds = array<i64: 1>, scalar_prefetch = 0 : i64, scratch_operands = 0 : i64, tpu.core_type = #tpu.core_type<tc>, window_params = [{transform_indices = @transform_0, window_bounds = array<i64: 8, 64>}, {pipeline_mode = #tpu.pipeline_mode<synchronous>, transform_indices = @transform_1, window_bounds = array<i64: 64, 128>}, {pipeline_mode = #tpu.pipeline_mode<synchronous>, transform_indices = @transform_2, window_bounds = array<i64: 1, 128>}, {pipeline_mode = #tpu.pipeline_mode<synchronous>, transform_indices = @transform_3, window_bounds = array<i64: 1, 128>}, {pipeline_mode = #tpu.pipeline_mode<synchronous>, transform_indices = @transform_4, window_bounds = array<i64: 1, 1>}, {transform_indices = @transform_5, window_bounds = array<i64: 1, 8>}]} {
    %c0 = arith.constant 0 : index
    %c0_0 = arith.constant 0 : index
    %0 = vector.load %arg1[%c0, %c0_0] : memref<8x64xf32, #tpu.memory_space<vmem>>, vector<8x64xf32>
    %1 = arith.truncf %0 : vector<8x64xf32> to vector<8x64xbf16>
    %c0_1 = arith.constant 0 : index
    %c0_2 = arith.constant 0 : index
    %2 = vector.load %arg2[%c0_1, %c0_2] : memref<64x128xbf16, #tpu.memory_space<vmem>>, vector<64x128xbf16>
    %cst = arith.constant dense<0.000000e+00> : vector<8x128xf32>
    %3 = tpu.matmul %1, %2, %cst {dimension_numbers = #tpu.dot_dimension_numbers<[1], [0], [0], [1], [0, 0, 1, 1], [], []>} : vector<8x64xbf16>, vector<64x128xbf16>, vector<8x128xf32> -> vector<8x128xf32>
    %c0_3 = arith.constant 0 : index
    %c0_4 = arith.constant 0 : index
    %4 = vector.load %arg3[%c0_3, %c0_4] : memref<1x128xf32, #tpu.memory_space<vmem>>, vector<1x128xf32>
    %5 = vector.broadcast %4 : vector<1x128xf32> to vector<8x128xf32>
    %6 = arith.addf %3, %5 : vector<8x128xf32>
    %cst_5 = arith.constant 1.000000e-01 : f32
    %7 = vector.broadcast %cst_5 : f32 to vector<8x128xf32>
    %8 = arith.mulf %7, %6 : vector<8x128xf32>
    %9 = arith.maximumf %6, %8 : vector<8x128xf32>
    %c0_6 = arith.constant 0 : index
    %c0_7 = arith.constant 0 : index
    %10 = vector.load %arg4[%c0_6, %c0_7] : memref<1x128xf32, #tpu.memory_space<vmem>>, vector<1x128xf32>
    %11 = vector.broadcast %10 : vector<1x128xf32> to vector<8x128xf32>
    %12 = arith.mulf %9, %11 : vector<8x128xf32>
    %cst_8 = arith.constant dense<0.000000e+00> : vector<8xf32>
    %13 = vector.multi_reduction <add>, %12, %cst_8 [1] : vector<8x128xf32> to vector<8xf32>
    %14 = vector.shape_cast %13 : vector<8xf32> to vector<1x8xf32>
    %c0_9 = arith.constant 0 : index
    %c0_10 = arith.constant 0 : index
    %15 = vector.load %arg5[%c0_9, %c0_10] : memref<1x1xf32, #tpu.memory_space<vmem>>, vector<1x1xf32>
    %16 = vector.broadcast %15 : vector<1x1xf32> to vector<1x8xf32>
    %17 = arith.addf %14, %16 : vector<1x8xf32>
    %cst_11 = arith.constant 0.000000e+00 : f32
    %18 = vector.broadcast %cst_11 : f32 to vector<1x8xf32>
    %19 = arith.subf %18, %17 : vector<1x8xf32>
    %20 = math.exp %19 : vector<1x8xf32>
    %cst_12 = arith.constant 1.000000e+00 : f32
    %21 = vector.broadcast %cst_12 : f32 to vector<1x8xf32>
    %22 = arith.addf %21, %20 : vector<1x8xf32>
    %23 = tpu.reciprocal %22 {approx = true} : vector<1x8xf32> -> vector<1x8xf32>
    %c0_13 = arith.constant 0 : index
    %c0_14 = arith.constant 0 : index
    %24 = vector.load %arg6[%c0_13, %c0_14] : memref<1x8xf32, #tpu.memory_space<vmem>>, vector<1x8xf32>
    tpu.vector_store %arg6[%c0_13, %c0_14], %23 {strides = array<i32>} : memref<1x8xf32, #tpu.memory_space<vmem>>, vector<1x8xf32>,
    return
  }
  func.func @transform_0(%arg0: i32) -> (i32, i32) {
    %c0_i32 = arith.constant 0 : i32
    %c0_i32_0 = arith.constant 0 : i32
    return %arg0, %c0_i32 : i32, i32
  }
  func.func @transform_1(%arg0: i32) -> (i32, i32) {
    %c0_i32 = arith.constant 0 : i32
    %c0_i32_0 = arith.constant 0 : i32
    %c0_i32_1 = arith.constant 0 : i32
    return %c0_i32, %c0_i32_0 : i32, i32
  }
  func.func @transform_2(%arg0: i32) -> (i32, i32) {
    %c0_i32 = arith.constant 0 : i32
    %c0_i32_0 = arith.constant 0 : i32
    %c0_i32_1 = arith.constant 0 : i32
    return %c0_i32, %c0_i32_0 : i32, i32
  }
  func.func @transform_3(%arg0: i32) -> (i32, i32) {
    %c0_i32 = arith.constant 0 : i32
    %c0_i32_0 = arith.constant 0 : i32
    %c0_i32_1 = arith.constant 0 : i32
    return %c0_i32, %c0_i32_0 : i32, i32
  }
  func.func @transform_4(%arg0: i32) -> (i32, i32) {
    %c0_i32 = arith.constant 0 : i32
    %c0_i32_0 = arith.constant 0 : i32
    %c0_i32_1 = arith.constant 0 : i32
    return %c0_i32, %c0_i32_0 : i32, i32
  }
  func.func @transform_5(%arg0: i32) -> (i32, i32) {
    %c0_i32 = arith.constant 0 : i32
    %c0_i32_0 = arith.constant 0 : i32
    return %c0_i32, %arg0 : i32, i32
  }
}

</mosaic_0001>

<llo_original>
// kernel: tpu_custom_call.1
$region0: #{tpu_custom_call.1}
  #allocation0 [shape = 'u32[]', space=smem, size = 0x4, offset = 0x4, fixed_abs, tag = 'smem constant byte address 0x4 - core index']
  #allocation1 [shape = 'u32[144,128]{1,0:T(1,128)}', space=vmem, size = 0x12000, scoped, tag = 'internal scratch']
  #allocation2 [shape = 'f32[1,1]{1,0:T(1,128)S(1)}', space=vmem, size = 0x200, scoped, tag = 'scoped memory for tpu_custom_call.1']
  %s0 = inlined_call_operand.hbm [shape: f32[8,64], index: 0, kind: input, shape index: {}]
  %s1 = inlined_call_operand.hbm [shape: bf16[64,128], index: 1, kind: input, shape index: {}]
  %s2 = inlined_call_operand.vmem [shape: f32[1,128], index: 2, kind: input, shape index: {}]
  %s3 = inlined_call_operand.vmem [shape: f32[1,128], index: 3, kind: input, shape index: {}]
  %s4 = inlined_call_operand.<no memory space> [shape: f32[1,1], index: 4, kind: input, shape index: {}]
  %s5 = inlined_call_operand.hbm [shape: f32[1,8], index: 5, kind: output, shape index: {}]
  %s6 = sld [smem:[#allocation0]]
  $region38: #{tpu_custom_call.1} parent=0
    _
  %s8 = ssub.s32 1, %s6
  %s9 = scalar_select 0, %s8, %s6
  %v10 = vstv %s4
  %11 = vst [vmem:[#allocation2] sm:$0x1] %v10
  $region1: #{tpu_custom_call.1} parent=0
    #allocation3 [shape = 'u8[4096]{0}', space=vmem, size = 0x1000, scoped, tag = 'input window, operand 0, single buffered']
    #allocation4 [shape = 's32[1]{0}', space=sflag, size = 0x4, scoped, tag = 'scoped memory for tpu_custom_call.1']
    #allocation5 [shape = 's32[1]{0}', space=sflag, size = 0x4, scoped, tag = 'scoped memory for tpu_custom_call.1']
    #allocation6 [shape = 'u8[16384]{0}', space=vmem, size = 0x4000, scoped, tag = 'input window, operand 1, single buffered']
    #allocation7 [shape = 's32[1]{0}', space=sflag, size = 0x4, scoped, tag = 'scoped memory for tpu_custom_call.1']
    #allocation8 [shape = 'u8[512]{0}', space=vmem, size = 0x400, scoped, tag = 'output window, operand 0, single buffered']
    %12 = vsyncpa [#allocation4], 0
    %13 = vsyncpa [#allocation7], 0
    %14 = vsyncpa [#allocation5], 0
    // Predicated region
    $region2: #{tpu_custom_call.1} parent=1 // pred_check
      _
    $region3: #{tpu_custom_call.1} parent=1 // pred_check_branch
      %16 = sbr.rel (0) target = $region5
    $region4: #{tpu_custom_call.1} parent=1 // pred_region
      %s18 = ssub.s32 128, 128
      %19 = vsyncadd [#allocation4], %s18
      %s21 = sshll.u32 [#allocation3], 4
      %s22 = int_to_ptr.vmem [resolvable:$true] %s21
      %24 = dma.hbm_to_vmem [thread:$0]  %s0, 128, %s22, [#allocation4]
    $region5: #{tpu_custom_call.1} parent=1 // pred_fallthru
      _
    // Predicated region
    $region6: #{tpu_custom_call.1} parent=1 // pred_check
      _
    $region7: #{tpu_custom_call.1} parent=1 // pred_check_branch
      %26 = sbr.rel (0) target = $region9
    $region8: #{tpu_custom_call.1} parent=1 // pred_region
      %s28 = ssub.s32 512, 512
      %29 = vsyncadd [#allocation7], %s28
      %s30 = sshll.u32 [#allocation6], 4
      %s31 = int_to_ptr.vmem [resolvable:$true] %s30
      %36 = dma.hbm_to_vmem [thread:$0]  %s1, 512, %s31, [#allocation7], 64, 64, 4
    $region9: #{tpu_custom_call.1} parent=1 // pred_fallthru
      _
    // Predicated region
    $region10: #{tpu_custom_call.1} parent=1 // pred_check
      _
    $region11: #{tpu_custom_call.1} parent=1 // pred_check_branch
      %38 = sbr.rel (0) target = $region13
    $region12: #{tpu_custom_call.1} parent=1 // pred_region
      _
    $region13: #{tpu_custom_call.1} parent=1 // pred_fallthru
      _
    // Predicated region
    $region14: #{tpu_custom_call.1} parent=1 // pred_check
      _
    $region15: #{tpu_custom_call.1} parent=1 // pred_check_branch
      %40 = sbr.rel (0) target = $region17
    $region16: #{tpu_custom_call.1} parent=1 // pred_region
      _
    $region17: #{tpu_custom_call.1} parent=1 // pred_fallthru
      _
    // Predicated region
    $region18: #{tpu_custom_call.1} parent=1 // pred_check
      _
    $region19: #{tpu_custom_call.1} parent=1 // pred_check_branch
      %42 = sbr.rel (0) target = $region21
    $region20: #{tpu_custom_call.1} parent=1 // pred_region
      _
    $region21: #{tpu_custom_call.1} parent=1 // pred_fallthru
      _
    // Predicated region
    $region22: #{tpu_custom_call.1} parent=1 // pred_check
      _
    $region23: #{tpu_custom_call.1} parent=1 // pred_check_branch
      %44 = sbr.rel (0) target = $region25
    $region24: #{tpu_custom_call.1} parent=1 // pred_region
      %45 = dma.done [#allocation4], 128
    $region25: #{tpu_custom_call.1} parent=1 // pred_fallthru
      _
    // Predicated region
    $region26: #{tpu_custom_call.1} parent=1 // pred_check
      _
    $region27: #{tpu_custom_call.1} parent=1 // pred_check_branch
      %47 = sbr.rel (0) target = $region29
    $region28: #{tpu_custom_call.1} parent=1 // pred_region
      %48 = dma.done [#allocation7], 512
    $region29: #{tpu_custom_call.1} parent=1 // pred_fallthru
      _
    %v50 = vld [vmem:[#allocation3] sm:$0xff]
    %v51 = vpack.c.bf16 %v50, %v50
    %v52 = vld [vmem:[#allocation6] sm:$0xf]
    %v53 = vld [vmem:[#allocation6 + $0x4] sm:$0xf]
    %v54 = vld [vmem:[#allocation6 + $0x8] sm:$0xf]
    %v55 = vld [vmem:[#allocation6 + $0xc] sm:$0xf]
    %v56 = vld [vmem:[#allocation6 + $0x10] sm:$0xf]
    %v57 = vld [vmem:[#allocation6 + $0x14] sm:$0xf]
    %v58 = vld [vmem:[#allocation6 + $0x18] sm:$0xf]
    %v59 = vld [vmem:[#allocation6 + $0x1c] sm:$0xf]
    %v60 = vld [vmem:[%s2] sm:$0x1]
    %v62 = vlaneseq
    %v63 = vshrl.u32 %v62, 7
    %v64 = vsub.s32 0, %v63
    %v65 = vrot.slane %v60, %v64
    %v75 = vunpack.c.l.b16 %v52
    %v76 = vunpack.c.l.b16 %v53
    %v77 = vunpack.c.l.b16 %v54
    %v78 = vunpack.c.l.b16 %v55
    %v79 = vunpack.c.l.b16 %v56
    %v80 = vunpack.c.l.b16 %v57
    %v81 = vunpack.c.l.b16 %v58
    %v82 = vunpack.c.l.b16 %v59
    %v83 = vpack.c.b16 %v76, %v75
    %v84 = vpack.c.b16 %v78, %v77
    %v85 = vpack.c.b16 %v80, %v79
    %v86 = vpack.c.b16 %v82, %v81
    %vm91 = vcmask 523264
    %v93 = vsel %vm91, %v51, 0
    %95 = vmatprep.subr.bf16.mxu0 0
    %96 = vmatpush1.bf16.msra.mxu0 0
    %97 = vmatprep.subr.bf16.mxu0 0
    %98 = vmatpush1.bf16.msra.mxu0 0
    %99 = vmatprep.subr.bf16.mxu0 0
    %100 = vmatpush1.bf16.msra.mxu0 0
    %101 = vmatprep.subr.bf16.mxu0 0
    %102 = vmatpush1.bf16.msra.mxu0 0
    %103 = vmatprep.subr.bf16.mxu0 0
    %104 = vmatpush1.bf16.msra.mxu0 %v86
    %105 = vmatprep.subr.bf16.mxu0 0
    %106 = vmatpush1.bf16.msra.mxu0 %v85
    %107 = vmatprep.subr.bf16.mxu0 0
    %108 = vmatpush1.bf16.msra.mxu0 %v84
    %109 = vmatprep.subr.bf16.mxu0 0
    %110 = vmatpush1.bf16.msra.mxu0 %v83
    %111 = vmatprep.subr.bf16.mxu0 0
    %112 = vmatpush2.bf16.msra.mxu0 0
    %113 = vmatprep.subr.bf16.mxu0 0
    %114 = vmatpush2.bf16.msra.mxu0 0
    %115 = vmatprep.subr.bf16.mxu0 0
    %116 = vmatpush2.bf16.msra.mxu0 0
    %117 = vmatprep.subr.bf16.mxu0 0
    %118 = vmatpush2.bf16.msra.mxu0 0
    %119 = vmatprep.subr.bf16.mxu0 0
    %120 = vmatpush2.bf16.msra.mxu0 0
    %121 = vmatprep.subr.bf16.mxu0 0
    %122 = vmatpush2.bf16.msra.mxu0 0
    %123 = vmatprep.subr.bf16.mxu0 0
    %124 = vmatpush2.bf16.msra.mxu0 0
    %125 = vmatprep.subr.bf16.mxu0 0
    %126 = vmatpush2.bf16.msra.mxu0 0
    %127 = vmatprep.mubr.bf16.mxu0 0
    %128 = vmatmul.mubr.bf16.gmra.mxu0 %v93
    %v129 = vpop.f32.mrf.mxu0
    %v130 = vadd.f32 %v65, %v129
    %v131 = vpop.f32.mrf.mxu0
    %v132 = vpop.f32.mrf.mxu0
    %v133 = vpop.f32.mrf.mxu0
    %134 = vdwg.mxu0
    %v135 = vmul.f32 %v130, 0.1
    %v136 = vmax.f32 %v130, %v135
    %v137 = vld [vmem:[%s3] sm:$0x1]
    %v139 = vlaneseq
    %v140 = vshrl.u32 %v139, 7
    %v141 = vsub.s32 0, %v140
    %v142 = vrot.slane %v137, %v141
    %v144 = vmul.f32 %v136, %v142
    %145 = vadd.xlane.f32.xlu0 %v144
    %v146 = vpop.xlane.xlu0 %145
    %v147 = vld [vmem:[#allocation2] sm:$0x1]
    %149 = vset.pattern.permute.xlu0 0
    %150 = vperm.xlu0 %149, %v147
    %v151 = vpop.permute.xlu0 %150
    %v153 = vlaneseq
    %v154 = vshrl.u32 %v153, 7
    %v155 = vsub.s32 0, %v154
    %v156 = vrot.slane %v151, %v155
    %v157 = vadd.f32 %v146, %v156
    %v158 = vsub.f32 0.0, %v157
    %v159 = vmul.f32 %v158, 1.442695
    %v160 = vpow.pop %v159
    %v161 = vadd.f32 %v160, 1.0
    %v162 = vrcp.pop %v161
    %v164 = vlaneseq
    %v165 = vand.u32 %v164, 127
    %v166 = vlaneseq
    %v167 = vshrl.u32 %v166, 7
    %v168 = vsub.s32 %v165, %v167
    %v169 = vrot.slane %v162, %v168
    %vm171 = vcmask 57344
    %172 = vst.msk [vmem:[#allocation8] sm:$0x1] %vm171, %v169
    // Predicated region
    $region30: #{tpu_custom_call.1} parent=1 // pred_check
      _
    $region31: #{tpu_custom_call.1} parent=1 // pred_check_branch
      %174 = sbr.rel (0) target = $region33
    $region32: #{tpu_custom_call.1} parent=1 // pred_region
      %s176 = ssub.s32 16, 16
      %177 = vsyncadd [#allocation5], %s176
      %s179 = sshll.u32 [#allocation8], 4
      %s180 = int_to_ptr.vmem [resolvable:$true] %s179
      %182 = dma.vmem_to_hbm [thread:$0]  %s180, 16, %s5, [#allocation5]
    $region33: #{tpu_custom_call.1} parent=1 // pred_fallthru
      _
    // Predicated region
    $region34: #{tpu_custom_call.1} parent=1 // pred_check
      _
    $region35: #{tpu_custom_call.1} parent=1 // pred_check_branch
      %184 = sbr.rel (0) target = $region37
    $region36: #{tpu_custom_call.1} parent=1 // pred_region
      %185 = dma.done [#allocation5], 16
    $region37: #{tpu_custom_call.1} parent=1 // pred_fallthru
      _
    %186 = vsyncpa [#allocation4], 1
    %187 = vsyncpa [#allocation7], 1
    %188 = vsyncpa [#allocation5], 1

</llo_original>
